<compile_context>
chip_gen: v7x
topology: tpu7x:2x2x1
jax: 0.10.0
libtpu: 0.0.40
codegen_flags: <defaults>
</compile_context>

<pallas_src>
import functools

import jax
import jax.numpy as jnp
from jax.experimental import pallas as pl
from jax.experimental.pallas import tpu as pltpu


def _round_up(x: int, m: int) -> int:
    return (x + m - 1) // m * m


def critic_kernel(s_ref, a_ref, w1s_ref, w1a_ref, b1_ref, w2_ref, o_ref):
    # fc1: two small-K MXU pushes (state half + action half), f32 accumulate.
    h = jnp.dot(s_ref[...], w1s_ref[...], preferred_element_type=jnp.float32)
    h = h + jnp.dot(a_ref[...], w1a_ref[...], preferred_element_type=jnp.float32)
    h = jnp.maximum(h + b1_ref[...], 0.0)                     # bias + ReLU (VPU)
    # fc2 (+ folded bias unit): (1,Hp) @ (Hp,tb) -> (1,tb). The aligned h.T goes
    # through the XLU; the result row is lane-dense, so the store path is
    # unmasked vst + a dense writeback DMA instead of (tb,1) masked stores.
    v = jnp.dot(w2_ref[...], h.T, preferred_element_type=jnp.float32)
    o_ref[...] = v.astype(o_ref.dtype)


def prepare_params(w1, b1, w2, b2, state_dim):
    """One-time conversion from PyTorch layout to kernel-ready layout.

    w1: [H, S+A], b1: [H], w2: [1, H], b2: [1]
    Returns (w1s [S, Hp], w1a [A, Hp], b1p [1, Hp], w2p [1, Hp]) with
    Hp = round_up(H + 1, 128).  Lane H is a constant-1 "bias unit"
    (b1p[0,H] = 1, w2p[0,H] = b2) so fc2's bias needs no extra operand;
    remaining padded lanes are exact zeros through ReLU and fc2.
    """
    H, K = w1.shape
    action_dim = K - state_dim
    Hp = _round_up(H + 1, 128)          # +1 reserves a lane for the folded fc2 bias
    w1_t = jnp.transpose(w1).astype(jnp.float32)            # [S+A, H]
    w1s = jnp.zeros((state_dim, Hp), jnp.float32).at[:, :H].set(w1_t[:state_dim])
    w1a = jnp.zeros((action_dim, Hp), jnp.float32).at[:, :H].set(w1_t[state_dim:])
    b1p = (jnp.zeros((1, Hp), jnp.float32)
           .at[0, :H].set(b1.astype(jnp.float32))
           .at[0, H].set(1.0))                               # ReLU(0*x + 1) = 1
    w2p = (jnp.zeros((1, Hp), jnp.float32)
           .at[0, :H].set(jnp.reshape(w2, (H,)).astype(jnp.float32))
           .at[0, H].set(jnp.reshape(b2, ()).astype(jnp.float32)))  # carries b2
    return w1s, w1a, b1p, w2p


@functools.partial(jax.jit, static_argnames=("block_b",))
def critic_forward(state, action, params, block_b=2048):
    """state: [B, S], action: [B, A], params from prepare_params()."""
    w1s, w1a, b1p, w2p = params
    B, S = state.shape
    A = action.shape[1]
    Hp = w1s.shape[1]

    if B <= 512:
        # One grid step: fixed per-step overhead dominates tiny RL batches on
        # single-TC v5e/v6e.  tb is a sublane multiple so the in-kernel h.T
        # stays aligned; the (tiny) output slab is sliced back to B below.
        tb = _round_up(B, 8)
        bo = tb
    else:
        # >=2 grid steps so v7x's two TensorCores both get work; tiles stay big
        # (up to block_b) to amortize the ~0.35us/step overhead on v5e/v6e.
        # tb is a multiple of 128 so the ragged last output block is legal and
        # stores stay lane-dense.  Footprint << scoped VMEM on all generations.
        tb = min(block_b, _round_up(pl.cdiv(B, 2), 128))
        bo = B

    grid = pl.cdiv(bo, tb)

    out = pl.pallas_call(
        critic_kernel,
        out_shape=jax.ShapeDtypeStruct((1, bo), state.dtype),
        grid=(grid,),
        in_specs=[
            pl.BlockSpec((tb, S), lambda i: (i, 0)),    # state tile
            pl.BlockSpec((tb, A), lambda i: (i, 0)),    # action tile
            pl.BlockSpec((S, Hp), lambda i: (0, 0)),    # fc1 weight, state half (resident)
            pl.BlockSpec((A, Hp), lambda i: (0, 0)),    # fc1 weight, action half (resident)
            pl.BlockSpec((1, Hp), lambda i: (0, 0)),    # fc1 bias (+ bias-unit lane)
            pl.BlockSpec((1, Hp), lambda i: (0, 0)),    # fc2 weight row (+ folded fc2 bias)
        ],
        out_specs=pl.BlockSpec((1, tb), lambda i: (0, i)),   # lane-dense output slab
        compiler_params=pltpu.CompilerParams(
            dimension_semantics=("parallel",)),
    )(state, action, w1s, w1a, b1p, w2p)

    return out[0, :B].reshape(B, 1)


if __name__ == "__main__":
    key = jax.random.PRNGKey(0)
    ks, ka, kw1, kb1, kw2, kb2 = jax.random.split(key, 6)

    B, STATE_DIM, ACTION_DIM, HIDDEN = 8, 8, 4, 100

    state = jax.random.normal(ks, (B, STATE_DIM), dtype=jnp.float32)
    action = jax.random.normal(ka, (B, ACTION_DIM), dtype=jnp.float32)

    # Deterministic parameter init mirroring the module's __init__:
    #   weights ~ N(0, 0.1); biases use PyTorch's default Linear init
    #   (uniform in [-1/sqrt(fan_in), 1/sqrt(fan_in)]).
    in1 = STATE_DIM + ACTION_DIM
    w1 = 0.1 * jax.random.normal(kw1, (HIDDEN, in1), dtype=jnp.float32)
    b1 = jax.random.uniform(kb1, (HIDDEN,), dtype=jnp.float32,
                            minval=-1.0 / jnp.sqrt(in1), maxval=1.0 / jnp.sqrt(in1))
    w2 = 0.1 * jax.random.normal(kw2, (1, HIDDEN), dtype=jnp.float32)
    b2 = jax.random.uniform(kb2, (1,), dtype=jnp.float32,
                            minval=-1.0 / jnp.sqrt(HIDDEN), maxval=1.0 / jnp.sqrt(HIDDEN))

    # Weight prep is hoisted out of the per-step path (done once here).
    params = prepare_params(w1, b1, w2, b2, STATE_DIM)

    val = jax.block_until_ready(critic_forward(state, action, params))

    # Pure-JAX reference check of the exact PyTorch semantics.
    x = jnp.concatenate([state, action], axis=1)
    h_ref = jnp.maximum(x @ w1.T + b1, 0.0)
    val_ref = h_ref @ w2.T + b2
    assert val.shape == (B, 1)
    assert jnp.allclose(val, val_ref, atol=1e-5, rtol=1e-5)

    print("KERNEL_OK")
</pallas_src>

<mosaic_0001>
module attributes {stable_mosaic.version = 11 : i64} {
  func.func @critic_kernel(%arg0: i32, %arg1: memref<8x8xf32, #tpu.memory_space<vmem>>, %arg2: memref<8x4xf32, #tpu.memory_space<vmem>>, %arg3: memref<8x128xf32, #tpu.memory_space<vmem>>, %arg4: memref<4x128xf32, #tpu.memory_space<vmem>>, %arg5: memref<1x128xf32, #tpu.memory_space<vmem>>, %arg6: memref<1x128xf32, #tpu.memory_space<vmem>>, %arg7: memref<1x8xf32, #tpu.memory_space<vmem>>) attributes {dimension_semantics = [#tpu.dimension_semantics<parallel>], iteration_bounds = array<i64: 1>, scalar_prefetch = 0 : i64, scratch_operands = 0 : i64, tpu.core_type = #tpu.core_type<tc>, window_params = [{transform_indices = @transform_0, window_bounds = array<i64: 8, 8>}, {transform_indices = @transform_1, window_bounds = array<i64: 8, 4>}, {pipeline_mode = #tpu.pipeline_mode<synchronous>, transform_indices = @transform_2, window_bounds = array<i64: 8, 128>}, {pipeline_mode = #tpu.pipeline_mode<synchronous>, transform_indices = @transform_3, window_bounds = array<i64: 4, 128>}, {pipeline_mode = #tpu.pipeline_mode<synchronous>, transform_indices = @transform_4, window_bounds = array<i64: 1, 128>}, {pipeline_mode = #tpu.pipeline_mode<synchronous>, transform_indices = @transform_5, window_bounds = array<i64: 1, 128>}, {transform_indices = @transform_6, window_bounds = array<i64: 1, 8>}]} {
    %c0 = arith.constant 0 : index
    %c0_0 = arith.constant 0 : index
    %0 = vector.load %arg1[%c0, %c0_0] : memref<8x8xf32, #tpu.memory_space<vmem>>, vector<8x8xf32>
    %c0_1 = arith.constant 0 : index
    %c0_2 = arith.constant 0 : index
    %1 = vector.load %arg3[%c0_1, %c0_2] : memref<8x128xf32, #tpu.memory_space<vmem>>, vector<8x128xf32>
    %cst = arith.constant dense<0.000000e+00> : vector<8x128xf32>
    %2 = tpu.matmul %0, %1, %cst {dimension_numbers = #tpu.dot_dimension_numbers<[1], [0], [0], [1], [0, 0, 1, 1], [], []>} : vector<8x8xf32>, vector<8x128xf32>, vector<8x128xf32> -> vector<8x128xf32>
    %c0_3 = arith.constant 0 : index
    %c0_4 = arith.constant 0 : index
    %3 = vector.load %arg2[%c0_3, %c0_4] : memref<8x4xf32, #tpu.memory_space<vmem>>, vector<8x4xf32>
    %c0_5 = arith.constant 0 : index
    %c0_6 = arith.constant 0 : index
    %4 = vector.load %arg4[%c0_5, %c0_6] : memref<4x128xf32, #tpu.memory_space<vmem>>, vector<4x128xf32>
    %cst_7 = arith.constant dense<0.000000e+00> : vector<8x128xf32>
    %5 = tpu.matmul %3, %4, %cst_7 {dimension_numbers = #tpu.dot_dimension_numbers<[1], [0], [0], [1], [0, 0, 1, 1], [], []>} : vector<8x4xf32>, vector<4x128xf32>, vector<8x128xf32> -> vector<8x128xf32>
    %6 = arith.addf %2, %5 : vector<8x128xf32>
    %c0_8 = arith.constant 0 : index
    %c0_9 = arith.constant 0 : index
    %7 = vector.load %arg5[%c0_8, %c0_9] : memref<1x128xf32, #tpu.memory_space<vmem>>, vector<1x128xf32>
    %8 = vector.broadcast %7 : vector<1x128xf32> to vector<8x128xf32>
    %9 = arith.addf %6, %8 : vector<8x128xf32>
    %cst_10 = arith.constant 0.000000e+00 : f32
    %10 = vector.broadcast %cst_10 : f32 to vector<8x128xf32>
    %11 = arith.maximumf %9, %10 : vector<8x128xf32>
    %c0_11 = arith.constant 0 : index
    %c0_12 = arith.constant 0 : index
    %12 = vector.load %arg6[%c0_11, %c0_12] : memref<1x128xf32, #tpu.memory_space<vmem>>, vector<1x128xf32>
    %13 = tpu.transpose %11, [1, 0] : vector<8x128xf32> -> vector<128x8xf32>
    %cst_13 = arith.constant dense<0.000000e+00> : vector<1x8xf32>
    %14 = tpu.matmul %12, %13, %cst_13 {dimension_numbers = #tpu.dot_dimension_numbers<[1], [0], [0], [1], [0, 0, 1, 1], [], []>} : vector<1x128xf32>, vector<128x8xf32>, vector<1x8xf32> -> vector<1x8xf32>
    %c0_14 = arith.constant 0 : index
    %c0_15 = arith.constant 0 : index
    %15 = vector.load %arg7[%c0_14, %c0_15] : memref<1x8xf32, #tpu.memory_space<vmem>>, vector<1x8xf32>
    tpu.vector_store %arg7[%c0_14, %c0_15], %14 {strides = array<i32>} : memref<1x8xf32, #tpu.memory_space<vmem>>, vector<1x8xf32>,
    return
  }
  func.func @transform_0(%arg0: i32) -> (i32, i32) {
    %c0_i32 = arith.constant 0 : i32
    %c0_i32_0 = arith.constant 0 : i32
    return %arg0, %c0_i32 : i32, i32
  }
  func.func @transform_1(%arg0: i32) -> (i32, i32) {
    %c0_i32 = arith.constant 0 : i32
    %c0_i32_0 = arith.constant 0 : i32
    return %arg0, %c0_i32 : i32, i32
  }
  func.func @transform_2(%arg0: i32) -> (i32, i32) {
    %c0_i32 = arith.constant 0 : i32
    %c0_i32_0 = arith.constant 0 : i32
    %c0_i32_1 = arith.constant 0 : i32
    return %c0_i32, %c0_i32_0 : i32, i32
  }
  func.func @transform_3(%arg0: i32) -> (i32, i32) {
    %c0_i32 = arith.constant 0 : i32
    %c0_i32_0 = arith.constant 0 : i32
    %c0_i32_1 = arith.constant 0 : i32
    return %c0_i32, %c0_i32_0 : i32, i32
  }
  func.func @transform_4(%arg0: i32) -> (i32, i32) {
    %c0_i32 = arith.constant 0 : i32
    %c0_i32_0 = arith.constant 0 : i32
    %c0_i32_1 = arith.constant 0 : i32
    return %c0_i32, %c0_i32_0 : i32, i32
  }
  func.func @transform_5(%arg0: i32) -> (i32, i32) {
    %c0_i32 = arith.constant 0 : i32
    %c0_i32_0 = arith.constant 0 : i32
    %c0_i32_1 = arith.constant 0 : i32
    return %c0_i32, %c0_i32_0 : i32, i32
  }
  func.func @transform_6(%arg0: i32) -> (i32, i32) {
    %c0_i32 = arith.constant 0 : i32
    %c0_i32_0 = arith.constant 0 : i32
    return %c0_i32, %arg0 : i32, i32
  }
}

</mosaic_0001>

<llo_original>
// kernel: critic_forward.1
$region0: #{critic_forward.1}
  #allocation0 [shape = 'u32[]', space=smem, size = 0x4, offset = 0x4, fixed_abs, tag = 'smem constant byte address 0x4 - core index']
  #allocation1 [shape = 'u32[144,128]{1,0:T(1,128)}', space=vmem, size = 0x12000, scoped, tag = 'internal scratch']
  %s0 = inlined_call_operand.vmem [shape: f32[8,8], index: 0, kind: input, shape index: {}]
  %s1 = inlined_call_operand.vmem [shape: f32[8,4], index: 1, kind: input, shape index: {}]
  %s2 = inlined_call_operand.vmem [shape: f32[8,128], index: 2, kind: input, shape index: {}]
  %s3 = inlined_call_operand.vmem [shape: f32[4,128], index: 3, kind: input, shape index: {}]
  %s4 = inlined_call_operand.vmem [shape: f32[1,128], index: 4, kind: input, shape index: {}]
  %s5 = inlined_call_operand.vmem [shape: f32[1,128], index: 5, kind: input, shape index: {}]
  %s6 = inlined_call_operand.hbm [shape: f32[1,8], index: 6, kind: output, shape index: {}]
  %s7 = sld [smem:[#allocation0]]
  $region34: #{critic_forward.1} parent=0
    _
  %s9 = ssub.s32 1, %s7
  %s10 = scalar_select 0, %s9, %s7
  $region1: #{critic_forward.1} parent=0
    #allocation2 [shape = 'u8[512]{0}', space=vmem, size = 0x400, scoped, tag = 'output window, operand 0, single buffered']
    #allocation3 [shape = 's32[1]{0}', space=sflag, size = 0x4, scoped, tag = 'scoped memory for critic_forward.1']
    %11 = vsyncpa [#allocation3], 0
    // Predicated region
    $region2: #{critic_forward.1} parent=1 // pred_check
      _
    $region3: #{critic_forward.1} parent=1 // pred_check_branch
      %13 = sbr.rel (0) target = $region5
    $region4: #{critic_forward.1} parent=1 // pred_region
      _
    $region5: #{critic_forward.1} parent=1 // pred_fallthru
      _
    // Predicated region
    $region6: #{critic_forward.1} parent=1 // pred_check
      _
    $region7: #{critic_forward.1} parent=1 // pred_check_branch
      %15 = sbr.rel (0) target = $region9
    $region8: #{critic_forward.1} parent=1 // pred_region
      _
    $region9: #{critic_forward.1} parent=1 // pred_fallthru
      _
    // Predicated region
    $region10: #{critic_forward.1} parent=1 // pred_check
      _
    $region11: #{critic_forward.1} parent=1 // pred_check_branch
      %17 = sbr.rel (0) target = $region13
    $region12: #{critic_forward.1} parent=1 // pred_region
      _
    $region13: #{critic_forward.1} parent=1 // pred_fallthru
      _
    // Predicated region
    $region14: #{critic_forward.1} parent=1 // pred_check
      _
    $region15: #{critic_forward.1} parent=1 // pred_check_branch
      %19 = sbr.rel (0) target = $region17
    $region16: #{critic_forward.1} parent=1 // pred_region
      _
    $region17: #{critic_forward.1} parent=1 // pred_fallthru
      _
    // Predicated region
    $region18: #{critic_forward.1} parent=1 // pred_check
      _
    $region19: #{critic_forward.1} parent=1 // pred_check_branch
      %21 = sbr.rel (0) target = $region21
    $region20: #{critic_forward.1} parent=1 // pred_region
      _
    $region21: #{critic_forward.1} parent=1 // pred_fallthru
      _
    // Predicated region
    $region22: #{critic_forward.1} parent=1 // pred_check
      _
    $region23: #{critic_forward.1} parent=1 // pred_check_branch
      %23 = sbr.rel (0) target = $region25
    $region24: #{critic_forward.1} parent=1 // pred_region
      _
    $region25: #{critic_forward.1} parent=1 // pred_fallthru
      _
    %v24 = vld [vmem:[%s0] sm:$0xff]
    %v25 = vld [vmem:[%s2] sm:$0xff]
    %v26 = vld [vmem:[%s1] sm:$0xff]
    %v27 = vld [vmem:[%s3] sm:$0xf]
    %vm28 = vcmask 31744
    %v30 = vsel %vm28, %v26, 0
    %vm32 = vcmask 1043456
    %v34 = vsel %vm32, %v27, 0
    %36 = vmatprep.subr.mxu0 0.0
    %37 = vmatpush1.msra.mxu0 %v34
    %38 = vmatprep.subr.mxu0 0.0
    %39 = vmatpush1.msra.mxu0 0.0
    %40 = vmatprep.subr.mxu0 0.0
    %41 = vmatpush1.msra.mxu0 0.0
    %42 = vmatprep.subr.mxu0 0.0
    %43 = vmatpush1.msra.mxu0 0.0
    %44 = vmatprep.subr.mxu0 0.0
    %45 = vmatpush1.msra.mxu0 0.0
    %46 = vmatprep.subr.mxu0 0.0
    %47 = vmatpush1.msra.mxu0 0.0
    %48 = vmatprep.subr.mxu0 0.0
    %49 = vmatpush1.msra.mxu0 0.0
    %50 = vmatprep.subr.mxu0 0.0
    %51 = vmatpush1.msra.mxu0 0.0
    %52 = vmatprep.subr.mxu0 0.0
    %53 = vmatpush1.msra.mxu0 0.0
    %54 = vmatprep.subr.mxu0 0.0
    %55 = vmatpush1.msra.mxu0 0.0
    %56 = vmatprep.subr.mxu0 0.0
    %57 = vmatpush1.msra.mxu0 0.0
    %58 = vmatprep.subr.mxu0 0.0
    %59 = vmatpush1.msra.mxu0 0.0
    %60 = vmatprep.subr.mxu0 0.0
    %61 = vmatpush1.msra.mxu0 0.0
    %62 = vmatprep.subr.mxu0 0.0
    %63 = vmatpush1.msra.mxu0 0.0
    %64 = vmatprep.subr.mxu0 0.0
    %65 = vmatpush1.msra.mxu0 0.0
    %66 = vmatprep.subr.mxu0 0.0
    %67 = vmatpush1.msra.mxu0 0.0
    %68 = vmatprep.subr.mxu0 0.0
    %69 = vmatpush1.msra.mxu0 0.0
    %70 = vmatprep.subr.mxu0 0.0
    %71 = vmatpush1.msra.mxu0 0.0
    %72 = vmatprep.subr.mxu0 0.0
    %73 = vmatpush1.msra.mxu0 0.0
    %74 = vmatprep.subr.mxu0 0.0
    %75 = vmatpush1.msra.mxu0 0.0
    %76 = vmatprep.subr.mxu0 0.0
    %77 = vmatpush1.msra.mxu0 0.0
    %78 = vmatprep.subr.mxu0 0.0
    %79 = vmatpush1.msra.mxu0 0.0
    %80 = vmatprep.subr.mxu0 0.0
    %81 = vmatpush1.msra.mxu0 0.0
    %82 = vmatprep.subr.mxu0 0.0
    %83 = vmatpush1.msra.mxu0 0.0
    %84 = vmatprep.subr.mxu0 0.0
    %85 = vmatpush1.msra.mxu0 0.0
    %86 = vmatprep.subr.mxu0 0.0
    %87 = vmatpush1.msra.mxu0 0.0
    %88 = vmatprep.subr.mxu0 0.0
    %89 = vmatpush1.msra.mxu0 0.0
    %90 = vmatprep.subr.mxu0 0.0
    %91 = vmatpush1.msra.mxu0 0.0
    %92 = vmatprep.subr.mxu0 0.0
    %93 = vmatpush1.msra.mxu0 0.0
    %94 = vmatprep.subr.mxu0 0.0
    %95 = vmatpush1.msra.mxu0 0.0
    %96 = vmatprep.subr.mxu0 0.0
    %97 = vmatpush1.msra.mxu0 0.0
    %98 = vmatprep.subr.mxu0 0.0
    %99 = vmatpush1.msra.mxu0 0.0
    %100 = vmatprep.mubr.f32.mxu0 0.0
    %101 = vmatmul.mubr.f32.gmra.mrb[0].mxu0 %v30
    %v102 = vpop.f32.mrb[0].mxu0
    %v103 = vadd.f32 0.0, %v102
    %v104 = vpop.f32.mrb[0].mxu0
    %105 = vdwg.mxu0
    %vm106 = vcmask 64512
    %v108 = vsel %vm106, %v24, 0
    %110 = vmatprep.subr.mxu0 0.0
    %111 = vmatpush1.msra.mxu0 %v25
    %112 = vmatprep.subr.mxu0 0.0
    %113 = vmatpush1.msra.mxu0 0.0
    %114 = vmatprep.subr.mxu0 0.0
    %115 = vmatpush1.msra.mxu0 0.0
    %116 = vmatprep.subr.mxu0 0.0
    %117 = vmatpush1.msra.mxu0 0.0
    %118 = vmatprep.subr.mxu0 0.0
    %119 = vmatpush1.msra.mxu0 0.0
    %120 = vmatprep.subr.mxu0 0.0
    %121 = vmatpush1.msra.mxu0 0.0
    %122 = vmatprep.subr.mxu0 0.0
    %123 = vmatpush1.msra.mxu0 0.0
    %124 = vmatprep.subr.mxu0 0.0
    %125 = vmatpush1.msra.mxu0 0.0
    %126 = vmatprep.subr.mxu0 0.0
    %127 = vmatpush1.msra.mxu0 0.0
    %128 = vmatprep.subr.mxu0 0.0
    %129 = vmatpush1.msra.mxu0 0.0
    %130 = vmatprep.subr.mxu0 0.0
    %131 = vmatpush1.msra.mxu0 0.0
    %132 = vmatprep.subr.mxu0 0.0
    %133 = vmatpush1.msra.mxu0 0.0
    %134 = vmatprep.subr.mxu0 0.0
    %135 = vmatpush1.msra.mxu0 0.0
    %136 = vmatprep.subr.mxu0 0.0
    %137 = vmatpush1.msra.mxu0 0.0
    %138 = vmatprep.subr.mxu0 0.0
    %139 = vmatpush1.msra.mxu0 0.0
    %140 = vmatprep.subr.mxu0 0.0
    %141 = vmatpush1.msra.mxu0 0.0
    %142 = vmatprep.subr.mxu0 0.0
    %143 = vmatpush1.msra.mxu0 0.0
    %144 = vmatprep.subr.mxu0 0.0
    %145 = vmatpush1.msra.mxu0 0.0
    %146 = vmatprep.subr.mxu0 0.0
    %147 = vmatpush1.msra.mxu0 0.0
    %148 = vmatprep.subr.mxu0 0.0
    %149 = vmatpush1.msra.mxu0 0.0
    %150 = vmatprep.subr.mxu0 0.0
    %151 = vmatpush1.msra.mxu0 0.0
    %152 = vmatprep.subr.mxu0 0.0
    %153 = vmatpush1.msra.mxu0 0.0
    %154 = vmatprep.subr.mxu0 0.0
    %155 = vmatpush1.msra.mxu0 0.0
    %156 = vmatprep.subr.mxu0 0.0
    %157 = vmatpush1.msra.mxu0 0.0
    %158 = vmatprep.subr.mxu0 0.0
    %159 = vmatpush1.msra.mxu0 0.0
    %160 = vmatprep.subr.mxu0 0.0
    %161 = vmatpush1.msra.mxu0 0.0
    %162 = vmatprep.subr.mxu0 0.0
    %163 = vmatpush1.msra.mxu0 0.0
    %164 = vmatprep.subr.mxu0 0.0
    %165 = vmatpush1.msra.mxu0 0.0
    %166 = vmatprep.subr.mxu0 0.0
    %167 = vmatpush1.msra.mxu0 0.0
    %168 = vmatprep.subr.mxu0 0.0
    %169 = vmatpush1.msra.mxu0 0.0
    %170 = vmatprep.subr.mxu0 0.0
    %171 = vmatpush1.msra.mxu0 0.0
    %172 = vmatprep.subr.mxu0 0.0
    %173 = vmatpush1.msra.mxu0 0.0
    %174 = vmatprep.mubr.f32.mxu0 0.0
    %175 = vmatmul.mubr.f32.gmra.mrb[0].mxu0 %v108
    %v176 = vpop.f32.mrb[0].mxu0
    %v177 = vadd.f32 %v103, %v176
    %v178 = vpop.f32.mrb[0].mxu0
    %179 = vdwg.mxu0
    %v180 = vld [vmem:[%s4] sm:$0x1]
    %v182 = vlaneseq
    %v183 = vshrl.u32 %v182, 7
    %v184 = vsub.s32 0, %v183
    %v185 = vrot.slane %v180, %v184
    %v187 = vadd.f32 %v177, %v185
    %v188 = vmax.f32 %v187, 0.0
    %v189 = vld [vmem:[%s5] sm:$0x1]
    %190 = vmatprep.subr.mxu0 0.0
    %191 = vmatpush1.xpose.msra.mxu0 %v188
    %192 = vmatprep.subr.mxu0 0.0
    %193 = vmatpush1.xpose.msra.mxu0 0.0
    %194 = vmatprep.subr.mxu0 0.0
    %195 = vmatpush1.xpose.msra.mxu0 0.0
    %196 = vmatprep.subr.mxu0 0.0
    %197 = vmatpush1.xpose.msra.mxu0 0.0
    %198 = vmatprep.subr.mxu0 0.0
    %199 = vmatpush1.xpose.msra.mxu0 0.0
    %200 = vmatprep.subr.mxu0 0.0
    %201 = vmatpush1.xpose.msra.mxu0 0.0
    %202 = vmatprep.subr.mxu0 0.0
    %203 = vmatpush1.xpose.msra.mxu0 0.0
    %204 = vmatprep.subr.mxu0 0.0
    %205 = vmatpush1.xpose.msra.mxu0 0.0
    %206 = vmatprep.subr.mxu0 0.0
    %207 = vmatpush1.xpose.msra.mxu0 0.0
    %208 = vmatprep.subr.mxu0 0.0
    %209 = vmatpush1.xpose.msra.mxu0 0.0
    %210 = vmatprep.subr.mxu0 0.0
    %211 = vmatpush1.xpose.msra.mxu0 0.0
    %212 = vmatprep.subr.mxu0 0.0
    %213 = vmatpush1.xpose.msra.mxu0 0.0
    %214 = vmatprep.subr.mxu0 0.0
    %215 = vmatpush1.xpose.msra.mxu0 0.0
    %216 = vmatprep.subr.mxu0 0.0
    %217 = vmatpush1.xpose.msra.mxu0 0.0
    %218 = vmatprep.subr.mxu0 0.0
    %219 = vmatpush1.xpose.msra.mxu0 0.0
    %220 = vmatprep.subr.mxu0 0.0
    %221 = vmatpush1.xpose.msra.mxu0 0.0
    %222 = vmatprep.subr.mxu0 0.0
    %223 = vmatpush1.xpose.msra.mxu0 0.0
    %224 = vmatprep.subr.mxu0 0.0
    %225 = vmatpush1.xpose.msra.mxu0 0.0
    %226 = vmatprep.subr.mxu0 0.0
    %227 = vmatpush1.xpose.msra.mxu0 0.0
    %228 = vmatprep.subr.mxu0 0.0
    %229 = vmatpush1.xpose.msra.mxu0 0.0
    %230 = vmatprep.subr.mxu0 0.0
    %231 = vmatpush1.xpose.msra.mxu0 0.0
    %232 = vmatprep.subr.mxu0 0.0
    %233 = vmatpush1.xpose.msra.mxu0 0.0
    %234 = vmatprep.subr.mxu0 0.0
    %235 = vmatpush1.xpose.msra.mxu0 0.0
    %236 = vmatprep.subr.mxu0 0.0
    %237 = vmatpush1.xpose.msra.mxu0 0.0
    %238 = vmatprep.subr.mxu0 0.0
    %239 = vmatpush1.xpose.msra.mxu0 0.0
    %240 = vmatprep.subr.mxu0 0.0
    %241 = vmatpush1.xpose.msra.mxu0 0.0
    %242 = vmatprep.subr.mxu0 0.0
    %243 = vmatpush1.xpose.msra.mxu0 0.0
    %244 = vmatprep.subr.mxu0 0.0
    %245 = vmatpush1.xpose.msra.mxu0 0.0
    %246 = vmatprep.subr.mxu0 0.0
    %247 = vmatpush1.xpose.msra.mxu0 0.0
    %248 = vmatprep.subr.mxu0 0.0
    %249 = vmatpush1.xpose.msra.mxu0 0.0
    %250 = vmatprep.subr.mxu0 0.0
    %251 = vmatpush1.xpose.msra.mxu0 0.0
    %252 = vmatprep.subr.mxu0 0.0
    %253 = vmatpush1.xpose.msra.mxu0 0.0
    %254 = vmatprep.mubr.f32.mxu0 0.0
    %255 = vmatmul.mubr.f32.gmra.mrb[0].mxu0 %v189
    %v256 = vpop.f32.mrb[0].mxu0
    %v257 = vadd.f32 0.0, %v256
    %v258 = vpop.f32.mrb[0].mxu0
    %259 = vdwg.mxu0
    %vm260 = vcmask 57344
    %261 = vst.msk [vmem:[#allocation2] sm:$0x1] %vm260, %v257
    // Predicated region
    $region26: #{critic_forward.1} parent=1 // pred_check
      _
    $region27: #{critic_forward.1} parent=1 // pred_check_branch
      %263 = sbr.rel (0) target = $region29
    $region28: #{critic_forward.1} parent=1 // pred_region
      %s265 = ssub.s32 16, 16
      %266 = vsyncadd [#allocation3], %s265
      %s268 = sshll.u32 [#allocation2], 4
      %s269 = int_to_ptr.vmem [resolvable:$true] %s268
      %271 = dma.vmem_to_hbm [thread:$0]  %s269, 16, %s6, [#allocation3]
    $region29: #{critic_forward.1} parent=1 // pred_fallthru
      _
    // Predicated region
    $region30: #{critic_forward.1} parent=1 // pred_check
      _
    $region31: #{critic_forward.1} parent=1 // pred_check_branch
      %273 = sbr.rel (0) target = $region33
    $region32: #{critic_forward.1} parent=1 // pred_region
      %274 = dma.done [#allocation3], 16
    $region33: #{critic_forward.1} parent=1 // pred_fallthru
      _
    %275 = vsyncpa [#allocation3], 1

</llo_original>
